<compile_context>
chip_gen: v6e
topology: v6e:2x2x1
jax: 0.10.0
libtpu: 0.0.40
codegen_flags: <defaults>
</compile_context>

<pallas_src>
import functools
import math

import jax
import jax.numpy as jnp
from jax.experimental import pallas as pl
from jax.experimental.pallas import tpu as pltpu

EPSILON = 1e-4


def _vmem_budgets():
    """Per-generation sizing: (double-buffered working-set budget, scoped-VMEM limit)."""
    try:
        cap = int(getattr(pltpu.get_tpu_info(), "vmem_capacity_bytes", 64 * 1024 * 1024))
    except Exception:  # interpret mode / older runtimes
        cap = 64 * 1024 * 1024
    budget = min(48 * 1024 * 1024, int(cap * 0.6))   # v5e/v6e: 48 MiB; v7x (64 MiB VMEM): ~38 MiB
    limit = min(64 * 1024 * 1024, int(cap * 0.8))    # v5e/v6e: 64 MiB; v7x: ~51 MiB
    return budget, limit


def _ffm3d_kernel(c1, c2, c3, w_ref, x1_ref, x2_ref, x3_ref, o_ref):
    """Fused scale + channel-concat for one (nb, C_all, ts) output block.

    w_ref  : (C_all, ts) f32 weight tile (row r = weight pattern for output channel r)
    xk_ref : (nb, Ck, ts) input tiles
    o_ref  : (nb, C_all, ts) output tile
    """
    w = w_ref[...]
    y1 = x1_ref[...] * w[0:c1, :]
    y2 = x2_ref[...] * w[c1:c1 + c2, :]
    y3 = x3_ref[...] * w[c1 + c2:, :]
    # Single unmasked whole-block store; the sublane concat uses the XLU, keeping the
    # store slot free of masked partial stores at channel boundaries.
    o_ref[...] = jnp.concatenate([y1, y2, y3], axis=1).astype(o_ref.dtype)


def _ffm2d_kernel(l1, l2, l3, w_ref, x1_ref, x2_ref, x3_ref, o_ref):
    """Small-spatial path: flattened per-batch rows.

    w_ref  : (1, C_all*S) f32 pattern
    xk_ref : (nb, Ck*S) input rows
    o_ref  : (nb, C_all*S) output rows
    """
    w = w_ref[...]
    y1 = x1_ref[...] * w[:, 0:l1]
    y2 = x2_ref[...] * w[:, l1:l1 + l2]
    y3 = x3_ref[...] * w[:, l1 + l2:]
    o_ref[...] = jnp.concatenate([y1, y2, y3], axis=1).astype(o_ref.dtype)


def _ffm_spatial_major(xs, segs, chans, N, H, W, out_dtype, in_item, out_item,
                       budget, vmem_limit):
    """Main path (S >= 128): (N, Ck, S) layout, lane = spatial."""
    C1, C2, C3 = chans
    C_all = C1 + C2 + C3
    S = H * W
    L = math.lcm(C1, C2, C3)

    # ---- spatial tile: lane-dense, VMEM-budgeted (x2 double buffering), and a multiple of
    # lcm(128, Ck) whenever possible so the weight pattern is block-invariant.
    col = 2 * C_all * (in_item + out_item + 4)          # bytes per lane column at nb=1 (+f32 weight)
    ts_cap = max(128, budget // col)
    if S <= ts_cap:
        ts = S
    else:
        step = math.lcm(L, 128)
        if step <= ts_cap:
            ts = (ts_cap // step) * step
        else:
            # TODO(synk): lcm(Ck,128) exceeds the VMEM tile; falls back to streaming a
            # (C_all, S) weight map (re-used across the batch-inner grid axis).
            ts = (ts_cap // 128) * 128

    # ---- batch tile
    per_row = 2 * C_all * (in_item + out_item) * ts
    w_bytes = 2 * C_all * 4 * ts
    nb = int(max(1, min(N, (budget - w_bytes) // max(per_row, 1))))

    # ---- megacore: guarantee >=2 grid blocks when possible (v7x has 2 TensorCores).
    if pl.cdiv(S, ts) * pl.cdiv(N, nb) < 2:
        if N >= 2:
            nb = (N + 1) // 2
        else:
            unit = math.lcm(L, 128)
            if unit > max(ts // 2, 1):
                unit = 128
            half = (ts // 2) // unit * unit
            if half >= 128:
                ts = half

    # Block-invariance of the weight pattern needs only ts % Ck == 0 (block offsets are
    # multiples of ts), or a single spatial block.
    invariant = (ts >= S) or all(ts % c == 0 for c in chans)

    # ---- per-channel weight pattern (f32).  Row for (segment k, local channel c):
    # P[row, s] = seg_k[(c*S + s) % Ck]   (the torch .view(N,H,W,C) broadcast).
    cols = ts if invariant else S
    s_idx = jnp.arange(cols)[None, :]
    rows = []
    for seg, ck in zip(segs, chans):
        c_idx = jnp.arange(ck)[:, None]
        rows.append(seg[(c_idx * S + s_idx) % ck])
    wpat = jnp.concatenate(rows, axis=0)                # (C_all, ts) or (C_all, S)
    # Constant block index -> fetched once.  Streamed fallback is re-used across the
    # batch-inner grid axis; its partial tail block reads past S, which Pallas pads and
    # whose output lanes are masked (benign).
    w_index_map = (lambda s, n: (0, 0)) if invariant else (lambda s, n: (0, s))

    # Zero-cost metadata reshapes: NCHW -> (N, C, S).
    x1_3d = xs[0].reshape(N, C1, S)
    x2_3d = xs[1].reshape(N, C2, S)
    x3_3d = xs[2].reshape(N, C3, S)

    grid = (pl.cdiv(S, ts), pl.cdiv(N, nb))             # spatial outer, batch inner

    out3d = pl.pallas_call(
        functools.partial(_ffm3d_kernel, C1, C2, C3),
        out_shape=jax.ShapeDtypeStruct((N, C_all, S), out_dtype),
        grid_spec=pltpu.PrefetchScalarGridSpec(
            num_scalar_prefetch=0,
            grid=grid,
            in_specs=[
                pl.BlockSpec((C_all, ts), w_index_map),
                pl.BlockSpec((nb, C1, ts), lambda s, n: (n, 0, s)),
                pl.BlockSpec((nb, C2, ts), lambda s, n: (n, 0, s)),
                pl.BlockSpec((nb, C3, ts), lambda s, n: (n, 0, s)),
            ],
            out_specs=pl.BlockSpec((nb, C_all, ts), lambda s, n: (n, 0, s)),
        ),
        compiler_params=pltpu.CompilerParams(
            dimension_semantics=("parallel", "parallel"),
            vmem_limit_bytes=vmem_limit,
        ),
    )(wpat, x1_3d, x2_3d, x3_3d)
    return out3d.reshape(N, C_all, H, W)


def _ffm_small_spatial(xs, segs, chans, N, H, W, out_dtype, in_item, out_item,
                       budget, vmem_limit):
    """Small-spatial path (S < 128): flattened (N, Ck*S) rows, lane-dense stores."""
    C1, C2, C3 = chans
    C_all = C1 + C2 + C3
    S = H * W
    l1, l2, l3 = C1 * S, C2 * S, C3 * S
    lout = C_all * S

    # Flat per-batch view (pure metadata reshape of the NCHW buffer).
    x1_2d = xs[0].reshape(N, l1)
    x2_2d = xs[1].reshape(N, l2)
    x3_2d = xs[2].reshape(N, l3)

    # Weight pattern along the flat lane axis: element j of input k scaled by seg_k[j % Ck].
    # (1, C_all*S) f32, constant block index -> fetched into VMEM once.
    wflat = jnp.concatenate([jnp.tile(seg, S) for seg in segs])[None, :]

    per_row = 2 * lout * (in_item + out_item)
    w_bytes = 2 * lout * 4
    if N <= 8:
        nb = N                                           # full-extent batch block (always legal)
    else:
        nb = max(8, (min(N, (budget - w_bytes) // max(per_row, 1)) // 8) * 8)

    grid = (pl.cdiv(N, nb),)
    out2d = pl.pallas_call(
        functools.partial(_ffm2d_kernel, l1, l2, l3),
        out_shape=jax.ShapeDtypeStruct((N, lout), out_dtype),
        grid_spec=pltpu.PrefetchScalarGridSpec(
            num_scalar_prefetch=0,
            grid=grid,
            in_specs=[
                pl.BlockSpec((1, lout), lambda n: (0, 0)),
                pl.BlockSpec((nb, l1), lambda n: (n, 0)),
                pl.BlockSpec((nb, l2), lambda n: (n, 0)),
                pl.BlockSpec((nb, l3), lambda n: (n, 0)),
            ],
            out_specs=pl.BlockSpec((nb, lout), lambda n: (n, 0)),
        ),
        compiler_params=pltpu.CompilerParams(
            dimension_semantics=("parallel",),
            vmem_limit_bytes=vmem_limit,
        ),
    )(wflat, x1_2d, x2_2d, x3_2d)
    return out2d.reshape(N, C_all, H, W)


def ffm_concat3(xs, w, eps=EPSILON):
    """Pallas implementation of FFM_Concat3.forward (dimension=1)."""
    x1, x2, x3 = xs
    N, C1, H, W = x1.shape
    _, C2, _, _ = x2.shape
    _, C3, _, _ = x3.shape
    if x2.shape[0] != N or x3.shape[0] != N or x2.shape[2:] != (H, W) or x3.shape[2:] != (H, W):
        raise ValueError("FFM_Concat3 inputs must share batch and spatial dims")
    chans = (C1, C2, C3)
    C_all = C1 + C2 + C3
    S = H * W
    out_dtype = x1.dtype
    in_item = jnp.dtype(x1.dtype).itemsize
    out_item = jnp.dtype(out_dtype).itemsize

    budget, vmem_limit = _vmem_budgets()

    # Tiny scalar normalization kept in plain-JAX glue (matches torch exactly).
    ww = w[:C_all].astype(jnp.float32)
    weight = ww / (jnp.sum(ww) + eps)
    segs = (weight[:C1], weight[C1:C1 + C2], weight[C1 + C2:])

    if S < 128:
        return _ffm_small_spatial(xs, segs, chans, N, H, W, out_dtype,
                                  in_item, out_item, budget, vmem_limit)
    return _ffm_spatial_major(xs, segs, chans, N, H, W, out_dtype,
                              in_item, out_item, budget, vmem_limit)


def ffm_concat3_ref(xs, w, eps=EPSILON):
    """Pure-JAX reference mirroring the PyTorch .view() semantics."""
    C1 = xs[0].shape[1]
    C2 = xs[1].shape[1]
    C3 = xs[2].shape[1]
    ww = w[: C1 + C2 + C3]
    weight = ww / (jnp.sum(ww) + eps)
    offs = [0, C1, C1 + C2, C1 + C2 + C3]
    outs = []
    for k, x in enumerate(xs):
        N, C, H, W = x.shape
        seg = weight[offs[k]: offs[k + 1]]
        xv = x.reshape(N, H, W, C)          # buffer reinterpretation, like torch .view
        outs.append((seg * xv).reshape(N, C, H, W))
    return jnp.concatenate(outs, axis=1)


if __name__ == "__main__":
    key = jax.random.PRNGKey(0)
    k1, k2, k3 = jax.random.split(key, 3)

    # 1) Main path: typical CNN shapes -> block-invariant weight pattern, fused concat.
    N, H, W = 2, 16, 16
    C1, C2, C3 = 4, 4, 8
    C_all = C1 + C2 + C3
    x1 = jax.random.normal(k1, (N, C1, H, W), dtype=jnp.float32)
    x2 = jax.random.normal(k2, (N, C2, H, W), dtype=jnp.float32)
    x3 = jax.random.normal(k3, (N, C3, H, W), dtype=jnp.float32)
    w = jnp.ones((C_all,), dtype=jnp.float32) + 0.1 * jnp.arange(C_all, dtype=jnp.float32)
    out = jax.block_until_ready(ffm_concat3([x1, x2, x3], w))
    ref = ffm_concat3_ref([x1, x2, x3], w)
    assert out.shape == (N, C_all, H, W), out.shape
    assert jnp.allclose(out, ref, atol=1e-6, rtol=1e-6), "mismatch vs reference (main path)"

    # 2) Small-spatial path (S < 128) with spatial size not divisible by every Ck.
    Hg, Wg = 10, 10
    y1 = jax.random.normal(k1, (N, C1, Hg, Wg), dtype=jnp.float32)
    y2 = jax.random.normal(k2, (N, C2, Hg, Wg), dtype=jnp.float32)
    y3 = jax.random.normal(k3, (N, C3, Hg, Wg), dtype=jnp.float32)
    out_g = jax.block_until_ready(ffm_concat3([y1, y2, y3], w))
    ref_g = ffm_concat3_ref([y1, y2, y3], w)
    assert jnp.allclose(out_g, ref_g, atol=1e-6, rtol=1e-6), "mismatch vs reference (small-S path)"

    # 3) Main path with channel counts that do not divide S (per-channel phase in the pattern).
    C1b, C2b, C3b = 3, 6, 12
    C_allb = C1b + C2b + C3b
    z1 = jax.random.normal(k1, (N, C1b, H, W), dtype=jnp.float32)
    z2 = jax.random.normal(k2, (N, C2b, H, W), dtype=jnp.float32)
    z3 = jax.random.normal(k3, (N, C3b, H, W), dtype=jnp.float32)
    wb = jnp.ones((C_allb,), dtype=jnp.float32) + 0.05 * jnp.arange(C_allb, dtype=jnp.float32)
    out_b = jax.block_until_ready(ffm_concat3([z1, z2, z3], wb))
    ref_b = ffm_concat3_ref([z1, z2, z3], wb)
    assert jnp.allclose(out_b, ref_b, atol=1e-6, rtol=1e-6), "mismatch vs reference (phase path)"

    print("KERNEL_OK")
</pallas_src>

<mosaic_0001>
module attributes {stable_mosaic.version = 11 : i64} {
  func.func @_ffm3d_kernel(%arg0: i32, %arg1: i32, %arg2: memref<16x256xf32, #tpu.memory_space<vmem>>, %arg3: memref<1x4x256xf32, #tpu.memory_space<vmem>>, %arg4: memref<1x4x256xf32, #tpu.memory_space<vmem>>, %arg5: memref<1x8x256xf32, #tpu.memory_space<vmem>>, %arg6: memref<1x16x256xf32, #tpu.memory_space<vmem>>) attributes {dimension_semantics = [#tpu.dimension_semantics<parallel>, #tpu.dimension_semantics<parallel>], iteration_bounds = array<i64: 1, 2>, scalar_prefetch = 0 : i64, scratch_operands = 0 : i64, tpu.core_type = #tpu.core_type<tc>, window_params = [{pipeline_mode = #tpu.pipeline_mode<synchronous>, transform_indices = @transform_0, window_bounds = array<i64: 16, 256>}, {transform_indices = @transform_1, window_bounds = array<i64: 1, 4, 256>}, {transform_indices = @transform_2, window_bounds = array<i64: 1, 4, 256>}, {transform_indices = @transform_3, window_bounds = array<i64: 1, 8, 256>}, {transform_indices = @transform_4, window_bounds = array<i64: 1, 16, 256>}]} {
    %c0 = arith.constant 0 : index
    %c0_0 = arith.constant 0 : index
    %0 = vector.load %arg2[%c0, %c0_0] : memref<16x256xf32, #tpu.memory_space<vmem>>, vector<16x256xf32>
    %c0_1 = arith.constant 0 : index
    %c0_2 = arith.constant 0 : index
    %c0_3 = arith.constant 0 : index
    %1 = vector.load %arg3[%c0_1, %c0_2, %c0_3] : memref<1x4x256xf32, #tpu.memory_space<vmem>>, vector<1x4x256xf32>
    %2 = vector.extract_strided_slice %0 {offsets = [0, 0], sizes = [4, 256], strides = [1, 1]} : vector<16x256xf32> to vector<4x256xf32>
    %3 = vector.shape_cast %2 : vector<4x256xf32> to vector<1x4x256xf32>
    %4 = arith.mulf %1, %3 : vector<1x4x256xf32>
    %c0_4 = arith.constant 0 : index
    %c0_5 = arith.constant 0 : index
    %c0_6 = arith.constant 0 : index
    %5 = vector.load %arg4[%c0_4, %c0_5, %c0_6] : memref<1x4x256xf32, #tpu.memory_space<vmem>>, vector<1x4x256xf32>
    %6 = vector.extract_strided_slice %0 {offsets = [4, 0], sizes = [4, 256], strides = [1, 1]} : vector<16x256xf32> to vector<4x256xf32>
    %7 = vector.shape_cast %6 : vector<4x256xf32> to vector<1x4x256xf32>
    %8 = arith.mulf %5, %7 : vector<1x4x256xf32>
    %c0_7 = arith.constant 0 : index
    %c0_8 = arith.constant 0 : index
    %c0_9 = arith.constant 0 : index
    %9 = vector.load %arg5[%c0_7, %c0_8, %c0_9] : memref<1x8x256xf32, #tpu.memory_space<vmem>>, vector<1x8x256xf32>
    %10 = vector.extract_strided_slice %0 {offsets = [8, 0], sizes = [8, 256], strides = [1, 1]} : vector<16x256xf32> to vector<8x256xf32>
    %11 = vector.shape_cast %10 : vector<8x256xf32> to vector<1x8x256xf32>
    %12 = arith.mulf %9, %11 : vector<1x8x256xf32>
    %13 = tpu.concatenate %4, %8, %12 in 1 : vector<1x4x256xf32>, vector<1x4x256xf32>, vector<1x8x256xf32> -> vector<1x16x256xf32>
    %c0_10 = arith.constant 0 : index
    %c0_11 = arith.constant 0 : index
    %c0_12 = arith.constant 0 : index
    %14 = vector.load %arg6[%c0_10, %c0_11, %c0_12] : memref<1x16x256xf32, #tpu.memory_space<vmem>>, vector<1x16x256xf32>
    tpu.vector_store %arg6[%c0_10, %c0_11, %c0_12], %13 {strides = array<i32>} : memref<1x16x256xf32, #tpu.memory_space<vmem>>, vector<1x16x256xf32>,
    return
  }
  func.func @transform_0(%arg0: i32, %arg1: i32) -> (i32, i32) {
    %c0_i32 = arith.constant 0 : i32
    %c0_i32_0 = arith.constant 0 : i32
    %c0_i32_1 = arith.constant 0 : i32
    return %c0_i32, %c0_i32_0 : i32, i32
  }
  func.func @transform_1(%arg0: i32, %arg1: i32) -> (i32, i32, i32) {
    %c0_i32 = arith.constant 0 : i32
    %c0_i32_0 = arith.constant 0 : i32
    return %arg1, %c0_i32, %arg0 : i32, i32, i32
  }
  func.func @transform_2(%arg0: i32, %arg1: i32) -> (i32, i32, i32) {
    %c0_i32 = arith.constant 0 : i32
    %c0_i32_0 = arith.constant 0 : i32
    return %arg1, %c0_i32, %arg0 : i32, i32, i32
  }
  func.func @transform_3(%arg0: i32, %arg1: i32) -> (i32, i32, i32) {
    %c0_i32 = arith.constant 0 : i32
    %c0_i32_0 = arith.constant 0 : i32
    return %arg1, %c0_i32, %arg0 : i32, i32, i32
  }
  func.func @transform_4(%arg0: i32, %arg1: i32) -> (i32, i32, i32) {
    %c0_i32 = arith.constant 0 : i32
    %c0_i32_0 = arith.constant 0 : i32
    return %arg1, %c0_i32, %arg0 : i32, i32, i32
  }
}

</mosaic_0001>

<llo_original>
// kernel: tpu_custom_call.1
$region0: #{tpu_custom_call.1}
  #allocation0 [shape = 'u32[]', space=smem, size = 0x4, offset = 0x4, fixed_abs, tag = 'smem constant byte address 0x4 - core index']
  #allocation1 [shape = 'u32[144,128]{1,0:T(1,128)}', space=vmem, size = 0x12000, scoped, tag = 'internal scratch']
  %s0 = inlined_call_operand.hbm [shape: f32[16,256], index: 0, kind: input, shape index: {}]
  %s1 = inlined_call_operand.hbm [shape: f32[2,4,256], index: 1, kind: input, shape index: {}]
  %s2 = inlined_call_operand.hbm [shape: f32[2,4,256], index: 2, kind: input, shape index: {}]
  %s3 = inlined_call_operand.hbm [shape: f32[2,8,256], index: 3, kind: input, shape index: {}]
  %s4 = inlined_call_operand.hbm [shape: f32[2,16,256], index: 4, kind: output, shape index: {}]
  %s5 = sld [smem:[#allocation0]]
  $region65: #{tpu_custom_call.1} parent=0
    _
  %s7 = ssub.s32 1, %s5
  %s8 = scalar_select 0, %s7, %s5
  $region1: #{tpu_custom_call.1} parent=0
    #allocation2 [shape = 'u8[16384]{0}', space=vmem, size = 0x4000, scoped, tag = 'input window, operand 0, single buffered']
    #allocation3 [shape = 's32[2]{0}', space=sflag, size = 0x8, scoped, tag = 'scoped memory for tpu_custom_call.1']
    #allocation4 [shape = 's32[2]{0}', space=sflag, size = 0x8, scoped, tag = 'scoped memory for tpu_custom_call.1']
    #allocation5 [shape = 'u8[8192]{0}', space=vmem, size = 0x2000, scoped, tag = 'input window, operand 1']
    #allocation6 [shape = 's32[2]{0}', space=sflag, size = 0x8, scoped, tag = 'scoped memory for tpu_custom_call.1']
    #allocation7 [shape = 'u8[8192]{0}', space=vmem, size = 0x2000, scoped, tag = 'input window, operand 2']
    #allocation8 [shape = 'u8[16384]{0}', space=vmem, size = 0x4000, scoped, tag = 'input window, operand 3']
    #allocation9 [shape = 's32[2]{0}', space=sflag, size = 0x8, scoped, tag = 'scoped memory for tpu_custom_call.1']
    #allocation10 [shape = 'u8[32768]{0}', space=vmem, size = 0x8000, scoped, tag = 'output window, operand 0']
    %9 = vsyncpa [#allocation3], 0
    %10 = vsyncpa [#allocation6], 0
    %s11 = scalar_lea.sflag [#allocation6], 1
    %12 = vsyncpa %s11, 0
    %13 = vsyncpa [#allocation9], 0
    %s14 = scalar_lea.sflag [#allocation9], 1
    %15 = vsyncpa %s14, 0
    %16 = vsyncpa [#allocation4], 0
    %s17 = scalar_lea.sflag [#allocation4], 1
    %18 = vsyncpa %s17, 0
    loop: start=0, step=1, limit=4
    $region2: #{tpu_custom_call.1} parent=1 // loop_pre_header
      _
    $region3: #{tpu_custom_call.1} parent=1 // loop_header
      %s20 = sphi 0, %s24
      %p21 = scmp.ge.s32.totalorder %s20, 4
      %s27 = sphi 0, %s39
      %s28 = sphi 0, %s35
      %s29 = sphi 0, %s27
      %s30 = sphi 0, %s28
      %s31 = sphi 0, %s29
      %s32 = sphi 0, %s30
      %s40 = sphi 0, %s40
      %s42 = sphi 0, %s40
      %s43 = sphi 0, %s42
      %s57 = sphi 0, %s43
      %s65 = sphi 0, %s67
      %s68 = sphi 0, %s65
      %s69 = sphi 0, %s68
      %s85 = sphi 0, %s69
      %s93 = sphi 0, %s95
      %s96 = sphi 0, %s93
      %s97 = sphi 0, %s96
      %s113 = sphi 0, %s97
      %s121 = sphi 0, %s123
      %s124 = sphi 0, %s121
      %s125 = sphi 0, %s124
      %s141 = sphi 0, %s125
      %s149 = sphi 0, %s151
      %s152 = sphi 0, %s149
      %s153 = sphi 0, %s152
      %s169 = sphi 0, %s153
    $region4: #{tpu_custom_call.1} parent=1 // loop_header_branch
      %23 = sbr.rel (%p21) target = $region8
    $region5: #{tpu_custom_call.1} parent=1 // loop_body
      %s25 = ssub.s32 %s20, 1
      %s26 = ssub.s32 %s20, 2
      %s33 = sadd.s32 1, %s28
      %p34 = scmp.ge.s32.totalorder %s33, 2
      %s35 = scalar_select %p34, 0, %s33
      %s36 = sadd.s32 1, %s27
      %s37 = scalar_select %p34, %s36, %s27
      %p38 = scmp.ge.s32.totalorder %s37, 1
      %s39 = scalar_select %p38, 0, %s37
      %s41 = sadd.s32 %s40, 1
      %p44 = scmp.eq.s32.totalorder %s20, 1
      %p45 = scmp.ne.s32.totalorder %s40, %s42
      %p46 = scmp.eq.s32.totalorder %s20, 0
      %p47 = por %p45, %p46
      %p48 = scmp.ne.s32.totalorder %s40, %s42
      %p49 = scmp.eq.s32.totalorder %s25, 1
      %p50 = por %p48, %p49
      %p51 = scmp.ne.s32.totalorder %s42, %s43
      %p52 = scmp.eq.s32.totalorder %s25, 0
      %p53 = por %p51, %p52
      %p54 = scmp.ne.s32.totalorder %s42, %s43
      %p55 = scmp.eq.s32.totalorder %s26, 1
      %p56 = por %p54, %p55
      %p58 = scmp.ne.s32.totalorder %s43, %s57
      %p59 = scmp.eq.s32.totalorder %s26, 0
      %p60 = por %p58, %p59
      %s61 = ssub.s32 %s28, %s35
      %s62 = ssub.s32 %s27, %s39
      %s63 = sor.u32 %s61, %s62
      %p64 = scmp.eq.s32.totalorder %s63, 0
      %s66 = sadd.s32 %s65, 1
      %s67 = scalar_select %p64, %s65, %s66
      %p70 = pneg %p64
      %p71 = scmp.eq.s32.totalorder %s20, 1
      %p72 = por %p70, %p71
      %p73 = scmp.ne.s32.totalorder %s65, %s68
      %p74 = scmp.eq.s32.totalorder %s20, 0
      %p75 = por %p73, %p74
      %p76 = scmp.ne.s32.totalorder %s65, %s68
      %p77 = scmp.eq.s32.totalorder %s25, 1
      %p78 = por %p76, %p77
      %p79 = scmp.ne.s32.totalorder %s68, %s69
      %p80 = scmp.eq.s32.totalorder %s25, 0
      %p81 = por %p79, %p80
      %p82 = scmp.ne.s32.totalorder %s68, %s69
      %p83 = scmp.eq.s32.totalorder %s26, 1
      %p84 = por %p82, %p83
      %p86 = scmp.ne.s32.totalorder %s69, %s85
      %p87 = scmp.eq.s32.totalorder %s26, 0
      %p88 = por %p86, %p87
      %s89 = ssub.s32 %s28, %s35
      %s90 = ssub.s32 %s27, %s39
      %s91 = sor.u32 %s89, %s90
      %p92 = scmp.eq.s32.totalorder %s91, 0
      %s94 = sadd.s32 %s93, 1
      %s95 = scalar_select %p92, %s93, %s94
      %p98 = pneg %p92
      %p99 = scmp.eq.s32.totalorder %s20, 1
      %p100 = por %p98, %p99
      %p101 = scmp.ne.s32.totalorder %s93, %s96
      %p102 = scmp.eq.s32.totalorder %s20, 0
      %p103 = por %p101, %p102
      %p104 = scmp.ne.s32.totalorder %s93, %s96
      %p105 = scmp.eq.s32.totalorder %s25, 1
      %p106 = por %p104, %p105
      %p107 = scmp.ne.s32.totalorder %s96, %s97
      %p108 = scmp.eq.s32.totalorder %s25, 0
      %p109 = por %p107, %p108
      %p110 = scmp.ne.s32.totalorder %s96, %s97
      %p111 = scmp.eq.s32.totalorder %s26, 1
      %p112 = por %p110, %p111
      %p114 = scmp.ne.s32.totalorder %s97, %s113
      %p115 = scmp.eq.s32.totalorder %s26, 0
      %p116 = por %p114, %p115
      %s117 = ssub.s32 %s28, %s35
      %s118 = ssub.s32 %s27, %s39
      %s119 = sor.u32 %s117, %s118
      %p120 = scmp.eq.s32.totalorder %s119, 0
      %s122 = sadd.s32 %s121, 1
      %s123 = scalar_select %p120, %s121, %s122
      %p126 = pneg %p120
      %p127 = scmp.eq.s32.totalorder %s20, 1
      %p128 = por %p126, %p127
      %p129 = scmp.ne.s32.totalorder %s121, %s124
      %p130 = scmp.eq.s32.totalorder %s20, 0
      %p131 = por %p129, %p130
      %p132 = scmp.ne.s32.totalorder %s121, %s124
      %p133 = scmp.eq.s32.totalorder %s25, 1
      %p134 = por %p132, %p133
      %p135 = scmp.ne.s32.totalorder %s124, %s125
      %p136 = scmp.eq.s32.totalorder %s25, 0
      %p137 = por %p135, %p136
      %p138 = scmp.ne.s32.totalorder %s124, %s125
      %p139 = scmp.eq.s32.totalorder %s26, 1
      %p140 = por %p138, %p139
      %p142 = scmp.ne.s32.totalorder %s125, %s141
      %p143 = scmp.eq.s32.totalorder %s26, 0
      %p144 = por %p142, %p143
      %s145 = ssub.s32 %s28, %s35
      %s146 = ssub.s32 %s27, %s39
      %s147 = sor.u32 %s145, %s146
      %p148 = scmp.eq.s32.totalorder %s147, 0
      %s150 = sadd.s32 %s149, 1
      %s151 = scalar_select %p148, %s149, %s150
      %p154 = pneg %p148
      %p155 = scmp.eq.s32.totalorder %s20, 1
      %p156 = por %p154, %p155
      %p157 = scmp.ne.s32.totalorder %s149, %s152
      %p158 = scmp.eq.s32.totalorder %s20, 0
      %p159 = por %p157, %p158
      %p160 = scmp.ne.s32.totalorder %s149, %s152
      %p161 = scmp.eq.s32.totalorder %s25, 1
      %p162 = por %p160, %p161
      %p163 = scmp.ne.s32.totalorder %s152, %s153
      %p164 = scmp.eq.s32.totalorder %s25, 0
      %p165 = por %p163, %p164
      %p166 = scmp.ne.s32.totalorder %s152, %s153
      %p167 = scmp.eq.s32.totalorder %s26, 1
      %p168 = por %p166, %p167
      %p170 = scmp.ne.s32.totalorder %s153, %s169
      %p171 = scmp.eq.s32.totalorder %s26, 0
      %p172 = por %p170, %p171
      %p173 = scmp.le.s32.totalorder 1, %s20
      %p174 = scmp.lt.s32.totalorder %s20, 3
      %p175 = pnand %p173, %p174
      %p176 = pneg %p175
      // Predicated region
      $region9: #{tpu_custom_call.1} parent=5 // pred_check
        _
      $region10: #{tpu_custom_call.1} parent=5 // pred_check_branch
        %178 = sbr.rel (%p175) target = $region12
      $region11: #{tpu_custom_call.1} parent=5 // pred_region
        %s179 = ssub.s32 %s20, 1
        // Predicated region
        $region13: #{tpu_custom_call.1} parent=11 // pred_check
          %p180 = pneg %p53
        $region14: #{tpu_custom_call.1} parent=11 // pred_check_branch
          %182 = sbr.rel (%p180) target = $region16
        $region15: #{tpu_custom_call.1} parent=11 // pred_region
          %s184 = ssub.s32 512, 512
          %185 = vsyncadd [#allocation3], %s184
          %s186 = sshll.u32 [#allocation2], 4
          %s187 = int_to_ptr.vmem [resolvable:$true] %s186
          %192 = dma.hbm_to_vmem [thread:$0]  %s0, 512, %s187, [#allocation3], 256, 256, 16
        $region16: #{tpu_custom_call.1} parent=11 // pred_fallthru
          _
      $region12: #{tpu_custom_call.1} parent=5 // pred_fallthru
        _
      %p193 = scmp.lt.s32.totalorder %s20, 2
      // Predicated region
      $region17: #{tpu_custom_call.1} parent=5 // pred_check
        %p194 = pneg %p193
      $region18: #{tpu_custom_call.1} parent=5 // pred_check_branch
        %196 = sbr.rel (%p194) target = $region20
      $region19: #{tpu_custom_call.1} parent=5 // pred_region
        // Predicated region
        $region21: #{tpu_custom_call.1} parent=19 // pred_check
          %p197 = pneg %p75
        $region22: #{tpu_custom_call.1} parent=19 // pred_check_branch
          %199 = sbr.rel (%p197) target = $region24
        $region23: #{tpu_custom_call.1} parent=19 // pred_region
          %s200 = sand.u32 %s20, 1
          %s201 = scalar_lea.sflag [#allocation6], %s200
          %s202 = sand.u32 %s65, 1
          %s203 = smul.addr %s202, 8
          %s204 = scalar_lea.vmem [#allocation5], %s203
          %s205 = smul.u32 2, %s27
          %s207 = ssub.s32 128, 128
          %208 = vsyncadd %s201, %s207
          %s209 = smul.addr %s28, 2
          %s210 = sadd.s32 %s205, %s209
          %s211 = smul.addr %s210, 64
          %s212 = scalar_lea.hbm %s1, %s211
          %s214 = sshll.u32 %s204, 4
          %s215 = int_to_ptr.vmem [resolvable:$true] %s214
          %217 = dma.hbm_to_vmem [thread:$0]  %s212, 128, %s215, %s201
        $region24: #{tpu_custom_call.1} parent=19 // pred_fallthru
          _
        // Predicated region
        $region25: #{tpu_custom_call.1} parent=19 // pred_check
          %p218 = pneg %p103
        $region26: #{tpu_custom_call.1} parent=19 // pred_check_branch
          %220 = sbr.rel (%p218) target = $region28
        $region27: #{tpu_custom_call.1} parent=19 // pred_region
          %s221 = sand.u32 %s20, 1
          %s222 = scalar_lea.sflag [#allocation6], %s221
          %s223 = sand.u32 %s93, 1
          %s224 = smul.addr %s223, 8
          %s225 = scalar_lea.vmem [#allocation7], %s224
          %s226 = smul.u32 2, %s27
          %s228 = ssub.s32 128, 128
          %229 = vsyncadd %s222, %s228
          %s230 = smul.addr %s28, 2
          %s231 = sadd.s32 %s226, %s230
          %s232 = smul.addr %s231, 64
          %s233 = scalar_lea.hbm %s2, %s232
          %s235 = sshll.u32 %s225, 4
          %s236 = int_to_ptr.vmem [resolvable:$true] %s235
          %238 = dma.hbm_to_vmem [thread:$0]  %s233, 128, %s236, %s222
        $region28: #{tpu_custom_call.1} parent=19 // pred_fallthru
          _
        // Predicated region
        $region29: #{tpu_custom_call.1} parent=19 // pred_check
          %p239 = pneg %p131
        $region30: #{tpu_custom_call.1} parent=19 // pred_check_branch
          %241 = sbr.rel (%p239) target = $region32
        $region31: #{tpu_custom_call.1} parent=19 // pred_region
          %s242 = sand.u32 %s121, 1
          %s243 = scalar_lea.sflag [#allocation9], %s242
          %s244 = sand.u32 %s121, 1
          %s245 = smul.addr %s244, 16
          %s246 = scalar_lea.vmem [#allocation8], %s245
          %s247 = smul.u32 2, %s27
          %s249 = ssub.s32 256, 256
          %250 = vsyncadd %s243, %s249
          %s251 = smul.addr %s28, 2
          %s252 = sadd.s32 %s247, %s251
          %s253 = smul.addr %s252, 128
          %s254 = scalar_lea.hbm %s3, %s253
          %s256 = sshll.u32 %s246, 4
          %s257 = int_to_ptr.vmem [resolvable:$true] %s256
          %259 = dma.hbm_to_vmem [thread:$0]  %s254, 256, %s257, %s243
        $region32: #{tpu_custom_call.1} parent=19 // pred_fallthru
          _
      $region20: #{tpu_custom_call.1} parent=5 // pred_fallthru
        _
      %p260 = scmp.le.s32.totalorder 1, %s20
      %p261 = scmp.lt.s32.totalorder %s20, 3
      %p262 = pnand %p260, %p261
      %p263 = pneg %p262
      // Predicated region
      $region33: #{tpu_custom_call.1} parent=5 // pred_check
        _
      $region34: #{tpu_custom_call.1} parent=5 // pred_check_branch
        %265 = sbr.rel (%p262) target = $region36
      $region35: #{tpu_custom_call.1} parent=5 // pred_region
        %s266 = ssub.s32 %s20, 1
        // Predicated region
        $region37: #{tpu_custom_call.1} parent=35 // pred_check
          %p267 = pneg %p53
        $region38: #{tpu_custom_call.1} parent=35 // pred_check_branch
          %269 = sbr.rel (%p267) target = $region40
        $region39: #{tpu_custom_call.1} parent=35 // pred_region
          %270 = dma.done [#allocation3], 512
        $region40: #{tpu_custom_call.1} parent=35 // pred_fallthru
          _
        %s271 = sand.u32 %s25, 1
        %s272 = scalar_lea.sflag [#allocation6], %s271
        %s273 = sand.u32 %s68, 1
        %s274 = smul.addr %s273, 8
        %s275 = scalar_lea.vmem [#allocation5], %s274
        // Predicated region
        $region41: #{tpu_custom_call.1} parent=35 // pred_check
          %p276 = pneg %p81
        $region42: #{tpu_custom_call.1} parent=35 // pred_check_branch
          %278 = sbr.rel (%p276) target = $region44
        $region43: #{tpu_custom_call.1} parent=35 // pred_region
          %279 = dma.done %s272, 128
        $region44: #{tpu_custom_call.1} parent=35 // pred_fallthru
          _
        %s280 = sand.u32 %s25, 1
        %s281 = scalar_lea.sflag [#allocation6], %s280
        %s282 = sand.u32 %s96, 1
        %s283 = smul.addr %s282, 8
        %s284 = scalar_lea.vmem [#allocation7], %s283
        // Predicated region
        $region45: #{tpu_custom_call.1} parent=35 // pred_check
          %p285 = pneg %p109
        $region46: #{tpu_custom_call.1} parent=35 // pred_check_branch
          %287 = sbr.rel (%p285) target = $region48
        $region47: #{tpu_custom_call.1} parent=35 // pred_region
          %288 = dma.done %s281, 128
        $region48: #{tpu_custom_call.1} parent=35 // pred_fallthru
          _
        %s289 = sand.u32 %s124, 1
        %s290 = scalar_lea.sflag [#allocation9], %s289
        %s291 = sand.u32 %s124, 1
        %s292 = smul.addr %s291, 16
        %s293 = scalar_lea.vmem [#allocation8], %s292
        // Predicated region
        $region49: #{tpu_custom_call.1} parent=35 // pred_check
          %p294 = pneg %p137
        $region50: #{tpu_custom_call.1} parent=35 // pred_check_branch
          %296 = sbr.rel (%p294) target = $region52
        $region51: #{tpu_custom_call.1} parent=35 // pred_region
          %297 = dma.done %s290, 256
        $region52: #{tpu_custom_call.1} parent=35 // pred_fallthru
          _
        %p298 = pneg %p53
        %p299 = pneg %p50
        %s300 = sand.u32 %s25, 1
        %s301 = scalar_lea.sflag [#allocation6], %s300
        %s302 = sand.u32 %s68, 1
        %s303 = smul.addr %s302, 8
        %s304 = scalar_lea.vmem [#allocation5], %s303
        %p305 = pneg %p81
        %p306 = pneg %p78
        %s307 = sand.u32 %s25, 1
        %s308 = scalar_lea.sflag [#allocation6], %s307
        %s309 = sand.u32 %s96, 1
        %s310 = smul.addr %s309, 8
        %s311 = scalar_lea.vmem [#allocation7], %s310
        %p312 = pneg %p109
        %p313 = pneg %p106
        %s314 = sand.u32 %s124, 1
        %s315 = scalar_lea.sflag [#allocation9], %s314
        %s316 = sand.u32 %s124, 1
        %s317 = smul.addr %s316, 16
        %s318 = scalar_lea.vmem [#allocation8], %s317
        %p319 = pneg %p137
        %p320 = pneg %p134
        %p321 = pneg %p165
        %p322 = pneg %p162
        %s323 = sand.u32 %s152, 1
        %s324 = scalar_lea.sflag [#allocation4], %s323
        %s325 = sand.u32 %s152, 1
        %s326 = smul.addr %s325, 32
        %s327 = scalar_lea.vmem [#allocation10], %s326
        %s328 = smul.u32 2, %s29
        %s329 = smul.u32 2, %s29
        %s330 = smul.u32 2, %s29
        %s331 = smul.u32 2, %s29
        %v332 = vld [vmem:[#allocation2] sm:$0xff]
        %v333 = vld [vmem:[#allocation2 + $0x8] sm:$0xff]
        %v334 = vld [vmem:[#allocation2 + $0x10] sm:$0xff]
        %v335 = vld [vmem:[#allocation2 + $0x18] sm:$0xff]
        %v336 = vld [vmem:[%s275] sm:$0xff]
        %v339 = vcombine.low %v332, %v333
        %v341 = vmul.f32 %v336, %v339
        %v342 = vld [vmem:[%s284] sm:$0xff]
        %v343 = vcombine.high %v332, %v333
        %v345 = vmul.f32 %v342, %v343
        %v346 = vld [vmem:[%s293] sm:$0xff]
        %v347 = vld [vmem:[%s293 + $0x8] sm:$0xff]
        %v348 = vmul.f32 %v346, %v334
        %v349 = vmul.f32 %v347, %v335
        %v351 = vcombine.high %v341, %v341
        %v354 = vcombine.low %v345, %v345
        %vm356 = vcmask 1043456
        %v357 = vsel %vm356, %v341, %v354
        %v358 = vsel %vm356, %v351, %v345
        %359 = vst [vmem:[%s327] sm:$0xff] %v357
        %360 = vst [vmem:[%s327 + $0x8] sm:$0xff] %v358
        %361 = vst [vmem:[%s327 + $0x10] sm:$0xff] %v348
        %362 = vst [vmem:[%s327 + $0x18] sm:$0xff] %v349
        %s363 = sand.u32 %s152, 1
        %s364 = scalar_lea.sflag [#allocation4], %s363
        %s365 = sand.u32 %s152, 1
        %s366 = smul.addr %s365, 32
        %s367 = scalar_lea.vmem [#allocation10], %s366
        // Predicated region
        $region53: #{tpu_custom_call.1} parent=35 // pred_check
          %p368 = pneg %p162
        $region54: #{tpu_custom_call.1} parent=35 // pred_check_branch
          %370 = sbr.rel (%p368) target = $region56
        $region55: #{tpu_custom_call.1} parent=35 // pred_region
          %s371 = smul.u32 2, %s29
          %s373 = ssub.s32 512, 512
          %374 = vsyncadd %s364, %s373
          %s375 = smul.addr %s30, 4
          %s376 = sadd.s32 %s371, %s375
          %s377 = smul.addr %s376, 128
          %s378 = scalar_lea.hbm %s4, %s377
          %s379 = sshll.u32 %s367, 4
          %s380 = int_to_ptr.vmem [resolvable:$true] %s379
          %385 = dma.vmem_to_hbm [thread:$0]  %s380, 512, %s378, %s364, 256, 256, 16
        $region56: #{tpu_custom_call.1} parent=35 // pred_fallthru
          _
      $region36: #{tpu_custom_call.1} parent=5 // pred_fallthru
        _
      %p386 = scmp.le.s32.totalorder 2, %s20
      // Predicated region
      $region57: #{tpu_custom_call.1} parent=5 // pred_check
        %p387 = pneg %p386
      $region58: #{tpu_custom_call.1} parent=5 // pred_check_branch
        %389 = sbr.rel (%p387) target = $region60
      $region59: #{tpu_custom_call.1} parent=5 // pred_region
        %s390 = ssub.s32 %s20, 2
        // Predicated region
        $region61: #{tpu_custom_call.1} parent=59 // pred_check
          %p391 = pneg %p168
        $region62: #{tpu_custom_call.1} parent=59 // pred_check_branch
          %393 = sbr.rel (%p391) target = $region64
        $region63: #{tpu_custom_call.1} parent=59 // pred_region
          %s394 = sand.u32 %s153, 1
          %s395 = scalar_lea.sflag [#allocation4], %s394
          %s396 = sand.u32 %s153, 1
          %s397 = smul.addr %s396, 32
          %s398 = scalar_lea.vmem [#allocation10], %s397
          %399 = dma.done %s395, 512
        $region64: #{tpu_custom_call.1} parent=59 // pred_fallthru
          _
      $region60: #{tpu_custom_call.1} parent=5 // pred_fallthru
        _
    $region6: #{tpu_custom_call.1} parent=1 // loop_footer
      %s24 = sadd.s32 1, %s20
    $region7: #{tpu_custom_call.1} parent=1 // loop_footer_branch
      %19 = sbr.rel target = $region3
    $region8: #{tpu_custom_call.1} parent=1 // loop_exit
      _
    %400 = vsyncpa [#allocation3], 1
    %s401 = scalar_lea.sflag [#allocation3], 1
    %402 = vsyncpa %s401, 1
    %403 = vsyncpa [#allocation6], 1
    %s404 = scalar_lea.sflag [#allocation6], 1
    %405 = vsyncpa %s404, 1
    %406 = vsyncpa [#allocation9], 1
    %s407 = scalar_lea.sflag [#allocation9], 1
    %408 = vsyncpa %s407, 1
    %409 = vsyncpa [#allocation4], 1
    %s410 = scalar_lea.sflag [#allocation4], 1
    %411 = vsyncpa %s410, 1

</llo_original>
